<compile_context>
chip_gen: v7x
topology: tpu7x:2x2x1
jax: 0.10.0
libtpu: 0.0.40
codegen_flags: <defaults>
</compile_context>

<pallas_src>
import jax
import jax.numpy as jnp
from jax.experimental import pallas as pl
from jax.experimental.pallas import tpu as pltpu


def _identity_alias_kernel(x_ref, o_ref, anchor_ref):
    # o_ref is aliased to x_ref (input_output_aliases={0: 0}): the result is
    # already in place, so the body moves no data.  The single SMEM scalar
    # store below is a trivially-lowerable anchor that keeps the kernel body
    # non-empty; it touches only scratch memory (no HBM / VMEM traffic).
    del x_ref, o_ref
    anchor_ref[0] = 0


def gcn_layer_forward(x, adj=None):
    """Pallas equivalent of gcn_layer.forward(x, adj): returns x unchanged.

    `adj` is accepted (and ignored) to mirror the PyTorch signature.
    """
    # TODO(synk): the reference module defines no weights and no adj-based
    # propagation (its forward is literally `return x`); nothing further to
    # translate.
    del adj
    return pl.pallas_call(
        _identity_alias_kernel,
        out_shape=jax.ShapeDtypeStruct(x.shape, x.dtype),
        # Leave both operands in place (HBM): no BlockSpec tiling, no auto-DMA,
        # no (8, 128) alignment constraints for any (N, F).
        in_specs=[pl.BlockSpec(memory_space=pl.ANY)],
        out_specs=pl.BlockSpec(memory_space=pl.ANY),
        scratch_shapes=[pltpu.SMEM((1,), jnp.int32)],
        # Output buffer == input buffer: the identity costs nothing.
        input_output_aliases={0: 0},
        # Advisory: this call does no compute and accesses no HBM bytes.
        cost_estimate=pl.CostEstimate(flops=0, transcendentals=0,
                                      bytes_accessed=0),
        compiler_params=pltpu.CompilerParams(
            # Keep the (otherwise no-op) call from being elided so the aliased
            # output always materialises.
            has_side_effects=True,
        ),
    )(x)


if __name__ == "__main__":
    key = jax.random.PRNGKey(0)
    kx, ka, kx2 = jax.random.split(key, 3)

    # GCN-style inputs: node features (N, F) and a dense adjacency (N, N).
    N, F = 16, 32
    x = jax.random.normal(kx, (N, F), dtype=jnp.float32)
    adj = (jax.random.uniform(ka, (N, N)) > 0.5).astype(jnp.float32)

    out = jax.block_until_ready(gcn_layer_forward(x, adj))
    assert out.shape == x.shape and out.dtype == x.dtype
    assert bool(jnp.array_equal(out, x))

    # Arbitrary / unaligned shapes also work: no tiling, padding or slicing.
    x2 = jax.random.normal(kx2, (50, 96), dtype=jnp.float32)
    out2 = jax.block_until_ready(gcn_layer_forward(x2, None))
    assert out2.shape == x2.shape and out2.dtype == x2.dtype
    assert bool(jnp.array_equal(out2, x2))

    # Under jit the call is a single (free) custom call; with
    # jax.jit(..., donate_argnums=(0,)) it becomes fully zero-copy.
    out3 = jax.block_until_ready(jax.jit(gcn_layer_forward)(x, adj))
    assert bool(jnp.array_equal(out3, x))

    print("KERNEL_OK")
</pallas_src>

<mosaic_0001>
module attributes {stable_mosaic.version = 11 : i64} {
  func.func @_identity_alias_kernel(%arg0: memref<16x32xf32, #tpu.memory_space<any>>, %arg1: memref<16x32xf32, #tpu.memory_space<any>>, %arg2: memref<1xi32, #tpu.memory_space<smem>>) attributes {dimension_semantics = [], scalar_prefetch = 0 : i64, scratch_operands = 1 : i64, tpu.core_type = #tpu.core_type<tc>} {
    %c0_i32 = arith.constant 0 : i32
    %c0 = arith.constant 0 : index
    %0 = memref.load %arg2[%c0] : memref<1xi32, #tpu.memory_space<smem>>
    memref.store %c0_i32, %arg2[%c0] : memref<1xi32, #tpu.memory_space<smem>>
    return
  }
}

</mosaic_0001>

<llo_original>
// kernel: tpu_custom_call.1
$region0: #{tpu_custom_call.1}
  #allocation0 [shape = 'u32[]', space=smem, size = 0x4, offset = 0x4, fixed_abs, tag = 'smem constant byte address 0x4 - core index']
  #allocation1 [shape = 'u32[144,128]{1,0:T(1,128)}', space=vmem, size = 0x12000, scoped, tag = 'internal scratch']
  #allocation2 [shape = 's32[1]{0:T(128)}', space=smem, size = 0x200, scoped, tag = 'scratch operand']
  %s0 = inlined_call_operand.hbm [shape: f32[16,32], index: 0, kind: input, shape index: {}, may-alias: {0,1}]
  %s1 = inlined_call_operand.hbm [shape: f32[16,32], index: 1, kind: output, shape index: {}, may-alias: {0,1}]
  %s2 = sld [smem:[#allocation0]]
  $region2: #{tpu_custom_call.1} parent=0
    _
  %s4 = ssub.s32 1, %s2
  %s5 = scalar_select 0, %s4, %s2
  %s6 = scalar_lea.smem [#allocation2], 0
  %7 = sst [smem:[%s6]] 0

</llo_original>
